<compile_context>
chip_gen: v7x
topology: tpu7x:2x2x1
jax: 0.10.0
libtpu: 0.0.40
codegen_flags: <defaults>
</compile_context>

<pallas_src>
import functools

import jax
import jax.numpy as jnp
from jax.experimental import pallas as pl
from jax.experimental.pallas import tpu as pltpu


def _gated_tconv_kernel(x_ref, wp_ref, wq_ref, bp_ref, bq_ref, o_ref,
                        *, K, off_step, L_in, L_out, shift_result, approx_gate):
    """One (batch, time-tile) grid step; residual already folded into wp/bp.

    x_ref : (C_in, L_in)        L_in = (T_tile + (K-1)*dia) * N  lane-dense
    wp_ref: (K, C_out, C_in)    P-half conv taps (residual folded into tap K-1)
    wq_ref: (K, C_out, C_in)    Q-half conv taps
    bp_ref: (C_out, 1)          P bias (+ residual bias)
    bq_ref: (C_out, 1)          Q bias
    o_ref : (C_out, L_out)      L_out = T_tile * N
    """
    # TODO(synk): when compute becomes MXU-visible (bf16 + large C), fuse the K
    # taps into a single (C_out, K*C_in) x (K*C_in, L_out) dot to fill MXU depth.
    if shift_result:
        # Aligned full-width dots; the lane shift is applied to the small
        # (C_out, L_in) results (cheap XLU rotate) instead of the x tile.
        x_full = x_ref[...]
        acc_p = jnp.dot(wp_ref[0], x_full,
                        preferred_element_type=jnp.float32)[:, 0:L_out]
        acc_q = jnp.dot(wq_ref[0], x_full,
                        preferred_element_type=jnp.float32)[:, 0:L_out]
        for k in range(1, K):
            off = k * off_step                       # static offset
            acc_p = acc_p + jnp.dot(wp_ref[k], x_full,
                                    preferred_element_type=jnp.float32)[:, off:off + L_out]
            acc_q = acc_q + jnp.dot(wq_ref[k], x_full,
                                    preferred_element_type=jnp.float32)[:, off:off + L_out]
    else:
        # Per-tap x slices (aligned when (dia*N) % 128 == 0; otherwise this is
        # still the cheaper option whenever 2*c_out > c_in).
        x0 = x_ref[:, 0:L_out]
        acc_p = jnp.dot(wp_ref[0], x0, preferred_element_type=jnp.float32)
        acc_q = jnp.dot(wq_ref[0], x0, preferred_element_type=jnp.float32)
        for k in range(1, K):
            off = k * off_step                       # static offset
            xk = x_ref[:, off:off + L_out]
            acc_p = acc_p + jnp.dot(wp_ref[k], xk, preferred_element_type=jnp.float32)
            acc_q = acc_q + jnp.dot(wq_ref[k], xk, preferred_element_type=jnp.float32)

    p = acc_p + bp_ref[...]                          # single bias broadcast each
    q = acc_q + bq_ref[...]
    # sigmoid via EUP (exp + reciprocal); exact divide in f32 mode.
    gate = pl.reciprocal(1.0 + jnp.exp(-q), approx=approx_gate)
    o_ref[...] = (p * gate).astype(o_ref.dtype)      # one lane-dense store


def temporal_conv_layer_residual(x, w_conv, b_conv, w_self=None, b_self=None,
                                 *, kernel=2, dia=1, compute_dtype=None,
                                 t_tile=None):
    """x: [B, C_in, T, N] (NCHW). Returns [B, C_out, T_new, N]."""
    B, c_in, T, N = x.shape
    two_c_out = w_conv.shape[0]
    c_out = two_c_out // 2
    assert two_c_out == 2 * c_out
    K = kernel
    halo_t = dia * (K - 1)
    T_new = T - halo_t
    assert T_new >= 1, "kernel / dilation too large for T"

    cdt = jnp.dtype(compute_dtype) if compute_dtype is not None else jnp.dtype(x.dtype)
    itemsize = cdt.itemsize

    # ---- tiny parameter prep (pure JAX) -------------------------------------
    # Split into P/Q halves; fold the residual into the P-half of the LAST tap:
    # the residual reads x[:, :, t + (K-1)*dia, :], exactly tap k = K-1.
    w = jnp.transpose(w_conv[:, :, :, 0], (2, 0, 1)).astype(jnp.float32)  # (K, 2*C_out, C_in)
    wp = w[:, :c_out, :]
    wq = w[:, c_out:, :]
    bp = b_conv[:c_out].astype(jnp.float32).reshape(c_out, 1)
    bq = b_conv[c_out:].astype(jnp.float32).reshape(c_out, 1)
    if c_in > c_out:
        r = w_self[:, :, 0, 0].astype(jnp.float32)        # 1x1-conv residual
        bp = bp + b_self.astype(jnp.float32).reshape(c_out, 1)
    else:
        r = jnp.eye(c_out, c_in, dtype=jnp.float32)       # identity / zero-pad residual
    wp = wp.at[K - 1].add(r)
    wp = wp.astype(cdt)
    wq = wq.astype(cdt)

    x_c = x.astype(cdt)   # bf16 here halves HBM read bytes (f32 kept by default)

    # ---- VMEM budgeting & (optional) time tiling ----------------------------
    try:
        vmem_cap = int(pltpu.get_tpu_info().vmem_capacity_bytes)
    except Exception:
        vmem_cap = 64 << 20            # conservative: v7x has 64 MiB per TC
    budget = (3 * vmem_cap) // 4       # headroom for compiler-internal scratch

    def est_bytes(t_out):
        l_in = (t_out + halo_t) * N
        l_out = t_out * N
        e = 2 * c_in * l_in * itemsize          # x block, double-buffered
        e += 2 * c_out * l_out * itemsize       # out block, double-buffered
        e += 2 * c_out * l_out * 4              # two f32 accumulators
        e += max(c_in, 2 * c_out) * l_in * 4    # slice / rotate temporaries
        e += 2 << 20                            # weights + misc headroom
        return e

    divisors = [d for d in range(1, T_new + 1) if T_new % d == 0]
    if t_tile is not None:
        T_tile = max(d for d in divisors if d <= max(1, min(int(t_tile), T_new)))
    elif est_bytes(T_new) <= budget:
        T_tile = T_new
    else:
        T_tile = 1
        for d in sorted(divisors, reverse=True):
            if est_bytes(d) <= budget:
                T_tile = d
                break
        # TODO(synk): if even T_tile == 1 exceeds the budget, also tile C_in / N.
    n_t = T_new // T_tile
    L_in = (T_tile + halo_t) * N
    L_out = T_tile * N

    if n_t == 1:
        x_in = x_c.reshape(B, 1, c_in, T * N)             # free reshape
    else:
        # Overlapping halo windows built once by XLA (one extra HBM pass over x,
        # only on the tiled path).
        # TODO(synk): an element-offset x BlockSpec or a manual make_async_copy
        # halo would avoid this extra pass.
        x_in = jnp.stack(
            [x_c[:, :, ti * T_tile: ti * T_tile + T_tile + halo_t, :]
             for ti in range(n_t)], axis=1).reshape(B, n_t, c_in, L_in)

    off_step = dia * N
    aligned = (off_step % 128 == 0)
    shift_result = (K > 1) and (not aligned) and (2 * c_out <= c_in)
    approx_gate = (cdt == jnp.dtype(jnp.bfloat16))

    kern = functools.partial(_gated_tconv_kernel, K=K, off_step=off_step,
                             L_in=L_in, L_out=L_out, shift_result=shift_result,
                             approx_gate=approx_gate)

    vmem_limit = int(min(max(est_bytes(T_tile), 32 << 20), (9 * vmem_cap) // 10))

    out = pl.pallas_call(
        kern,
        out_shape=jax.ShapeDtypeStruct((B, n_t, c_out, L_out), cdt),
        grid_spec=pltpu.PrefetchScalarGridSpec(
            num_scalar_prefetch=0,
            grid=(B, n_t),
            in_specs=[
                pl.BlockSpec((None, None, c_in, L_in), lambda bi, ti: (bi, ti, 0, 0)),
                pl.BlockSpec((K, c_out, c_in), lambda bi, ti: (0, 0, 0)),
                pl.BlockSpec((K, c_out, c_in), lambda bi, ti: (0, 0, 0)),
                pl.BlockSpec((c_out, 1), lambda bi, ti: (0, 0)),
                pl.BlockSpec((c_out, 1), lambda bi, ti: (0, 0)),
            ],
            out_specs=pl.BlockSpec((None, None, c_out, L_out),
                                   lambda bi, ti: (bi, ti, 0, 0)),
        ),
        compiler_params=pltpu.CompilerParams(
            dimension_semantics=("parallel", "parallel"),
            vmem_limit_bytes=vmem_limit),
    )(x_in, wp, wq, bp, bq)

    if n_t == 1:
        return out.reshape(B, c_out, T_new, N)            # free reshape
    out = out.reshape(B, n_t, c_out, T_tile, N)
    out = jnp.transpose(out, (0, 2, 1, 3, 4))             # only on the tiled path
    return out.reshape(B, c_out, T_new, N)


# ----------------------------- pure-JAX reference -----------------------------
def _reference(x, w_conv, b_conv, w_self, b_self, kernel, dia):
    B, c_in, T, N = x.shape
    c_out = w_conv.shape[0] // 2
    dn = ('NCHW', 'OIHW', 'NCHW')
    conv = jax.lax.conv_general_dilated(x, w_conv, (1, 1), 'VALID',
                                        rhs_dilation=(dia, 1),
                                        dimension_numbers=dn,
                                        precision=jax.lax.Precision.HIGHEST)
    conv = conv + b_conv[None, :, None, None]
    T_new = conv.shape[2]
    if c_in > c_out:
        x_self = jax.lax.conv_general_dilated(x, w_self, (1, 1), 'VALID',
                                              dimension_numbers=dn,
                                              precision=jax.lax.Precision.HIGHEST)
        x_self = x_self + b_self[None, :, None, None]
    elif c_in < c_out:
        x_self = jnp.concatenate(
            [x, jnp.zeros((B, c_out - c_in, T, N), x.dtype)], axis=1)
    else:
        x_self = x
    x_self = x_self[:, :, -T_new:, :]
    P = conv[:, :c_out]
    Q = conv[:, -c_out:]
    return (P + x_self) * jax.nn.sigmoid(Q)


def _run_case(key, B, c_in, c_out, T, N, kernel=2, dia=1, compute_dtype=None,
              t_tile=None, atol=2e-4, rtol=2e-4):
    k1, k2, k3, k4, k5 = jax.random.split(key, 5)
    x = jax.random.normal(k1, (B, c_in, T, N), jnp.float32)
    w_conv = 0.1 * jax.random.normal(k2, (2 * c_out, c_in, kernel, 1), jnp.float32)
    b_conv = 0.1 * jax.random.normal(k3, (2 * c_out,), jnp.float32)
    if c_in > c_out:
        w_self = 0.1 * jax.random.normal(k4, (c_out, c_in, 1, 1), jnp.float32)
        b_self = 0.1 * jax.random.normal(k5, (c_out,), jnp.float32)
    else:
        w_self, b_self = None, None

    got = temporal_conv_layer_residual(x, w_conv, b_conv, w_self, b_self,
                                       kernel=kernel, dia=dia,
                                       compute_dtype=compute_dtype,
                                       t_tile=t_tile)
    got = jax.block_until_ready(got)
    want = _reference(x, w_conv, b_conv, w_self, b_self, kernel, dia)
    T_new = T - dia * (kernel - 1)
    assert got.shape == (B, c_out, T_new, N), got.shape
    ok = jnp.allclose(got.astype(jnp.float32), want, atol=atol, rtol=rtol)
    assert ok, ("mismatch: max err "
                f"{jnp.max(jnp.abs(got.astype(jnp.float32) - want))}")


if __name__ == "__main__":
    key = jax.random.PRNGKey(0)
    ks = jax.random.split(key, 6)
    # c_in < c_out  -> zero-padded channel residual (per-tap x-slice path)
    _run_case(ks[0], B=2, c_in=4, c_out=8, T=8, N=16)
    # c_in > c_out  -> 1x1-conv residual (shift-the-result path: 2*c_out <= c_in)
    _run_case(ks[1], B=2, c_in=8, c_out=4, T=8, N=16)
    # c_in == c_out -> identity residual
    _run_case(ks[2], B=2, c_in=4, c_out=4, T=8, N=16)
    # dilation > 1
    _run_case(ks[3], B=2, c_in=4, c_out=4, T=16, N=16, dia=2)
    # forced time tiling (halo windows), exercises the n_t > 1 path
    _run_case(ks[4], B=2, c_in=4, c_out=4, T=10, N=16, t_tile=3)
    # bf16 compute path (MXU-native, half the HBM read bytes), looser tolerance
    _run_case(ks[5], B=2, c_in=8, c_out=8, T=8, N=16,
              compute_dtype=jnp.bfloat16, atol=8e-2, rtol=8e-2)
    print("KERNEL_OK")
</pallas_src>

<mosaic_0001>
module attributes {stable_mosaic.version = 11 : i64} {
  func.func @_gated_tconv_kernel(%arg0: i32, %arg1: i32, %arg2: memref<1x1x4x128xf32, #tpu.memory_space<vmem>>, %arg3: memref<2x8x4xf32, #tpu.memory_space<vmem>>, %arg4: memref<2x8x4xf32, #tpu.memory_space<vmem>>, %arg5: memref<8x1xf32, #tpu.memory_space<vmem>>, %arg6: memref<8x1xf32, #tpu.memory_space<vmem>>, %arg7: memref<1x1x8x112xf32, #tpu.memory_space<vmem>>) attributes {dimension_semantics = [#tpu.dimension_semantics<parallel>, #tpu.dimension_semantics<parallel>], iteration_bounds = array<i64: 2, 1>, scalar_prefetch = 0 : i64, scratch_operands = 0 : i64, tpu.core_type = #tpu.core_type<tc>, window_params = [{transform_indices = @transform_0, window_bounds = array<i64: 1, 1, 4, 128>}, {pipeline_mode = #tpu.pipeline_mode<synchronous>, transform_indices = @transform_1, window_bounds = array<i64: 2, 8, 4>}, {pipeline_mode = #tpu.pipeline_mode<synchronous>, transform_indices = @transform_2, window_bounds = array<i64: 2, 8, 4>}, {pipeline_mode = #tpu.pipeline_mode<synchronous>, transform_indices = @transform_3, window_bounds = array<i64: 8, 1>}, {pipeline_mode = #tpu.pipeline_mode<synchronous>, transform_indices = @transform_4, window_bounds = array<i64: 8, 1>}, {transform_indices = @transform_5, window_bounds = array<i64: 1, 1, 8, 112>}]} {
    %c0 = arith.constant 0 : index
    %c0_0 = arith.constant 0 : index
    %c0_1 = arith.constant 0 : index
    %c0_2 = arith.constant 0 : index
    %0 = vector.load %arg2[%c0, %c0_0, %c0_1, %c0_2] : memref<1x1x4x128xf32, #tpu.memory_space<vmem>>, vector<1x1x4x112xf32>
    %1 = vector.shape_cast %0 : vector<1x1x4x112xf32> to vector<4x112xf32>
    %c0_3 = arith.constant 0 : index
    %c0_4 = arith.constant 0 : index
    %c0_5 = arith.constant 0 : index
    %2 = vector.load %arg3[%c0_3, %c0_4, %c0_5] : memref<2x8x4xf32, #tpu.memory_space<vmem>>, vector<1x8x4xf32>
    %3 = vector.shape_cast %2 : vector<1x8x4xf32> to vector<8x4xf32>
    %cst = arith.constant dense<0.000000e+00> : vector<8x112xf32>
    %4 = tpu.matmul %3, %1, %cst {dimension_numbers = #tpu.dot_dimension_numbers<[1], [0], [0], [1], [0, 0, 1, 1], [], []>} : vector<8x4xf32>, vector<4x112xf32>, vector<8x112xf32> -> vector<8x112xf32>
    %c0_6 = arith.constant 0 : index
    %c0_7 = arith.constant 0 : index
    %c0_8 = arith.constant 0 : index
    %5 = vector.load %arg4[%c0_6, %c0_7, %c0_8] : memref<2x8x4xf32, #tpu.memory_space<vmem>>, vector<1x8x4xf32>
    %6 = vector.shape_cast %5 : vector<1x8x4xf32> to vector<8x4xf32>
    %cst_9 = arith.constant dense<0.000000e+00> : vector<8x112xf32>
    %7 = tpu.matmul %6, %1, %cst_9 {dimension_numbers = #tpu.dot_dimension_numbers<[1], [0], [0], [1], [0, 0, 1, 1], [], []>} : vector<8x4xf32>, vector<4x112xf32>, vector<8x112xf32> -> vector<8x112xf32>
    %c0_10 = arith.constant 0 : index
    %c0_11 = arith.constant 0 : index
    %c0_12 = arith.constant 0 : index
    %c16 = arith.constant 16 : index
    %8 = vector.load %arg2[%c0_10, %c0_11, %c0_12, %c16] : memref<1x1x4x128xf32, #tpu.memory_space<vmem>>, vector<1x1x4x112xf32>
    %9 = vector.shape_cast %8 : vector<1x1x4x112xf32> to vector<4x112xf32>
    %c1 = arith.constant 1 : index
    %c0_13 = arith.constant 0 : index
    %c0_14 = arith.constant 0 : index
    %10 = vector.load %arg3[%c1, %c0_13, %c0_14] : memref<2x8x4xf32, #tpu.memory_space<vmem>>, vector<1x8x4xf32>
    %11 = vector.shape_cast %10 : vector<1x8x4xf32> to vector<8x4xf32>
    %cst_15 = arith.constant dense<0.000000e+00> : vector<8x112xf32>
    %12 = tpu.matmul %11, %9, %cst_15 {dimension_numbers = #tpu.dot_dimension_numbers<[1], [0], [0], [1], [0, 0, 1, 1], [], []>} : vector<8x4xf32>, vector<4x112xf32>, vector<8x112xf32> -> vector<8x112xf32>
    %13 = arith.addf %4, %12 : vector<8x112xf32>
    %c1_16 = arith.constant 1 : index
    %c0_17 = arith.constant 0 : index
    %c0_18 = arith.constant 0 : index
    %14 = vector.load %arg4[%c1_16, %c0_17, %c0_18] : memref<2x8x4xf32, #tpu.memory_space<vmem>>, vector<1x8x4xf32>
    %15 = vector.shape_cast %14 : vector<1x8x4xf32> to vector<8x4xf32>
    %cst_19 = arith.constant dense<0.000000e+00> : vector<8x112xf32>
    %16 = tpu.matmul %15, %9, %cst_19 {dimension_numbers = #tpu.dot_dimension_numbers<[1], [0], [0], [1], [0, 0, 1, 1], [], []>} : vector<8x4xf32>, vector<4x112xf32>, vector<8x112xf32> -> vector<8x112xf32>
    %17 = arith.addf %7, %16 : vector<8x112xf32>
    %c0_20 = arith.constant 0 : index
    %c0_21 = arith.constant 0 : index
    %18 = vector.load %arg5[%c0_20, %c0_21] : memref<8x1xf32, #tpu.memory_space<vmem>>, vector<8x1xf32>
    %19 = vector.broadcast %18 : vector<8x1xf32> to vector<8x112xf32>
    %20 = arith.addf %13, %19 : vector<8x112xf32>
    %c0_22 = arith.constant 0 : index
    %c0_23 = arith.constant 0 : index
    %21 = vector.load %arg6[%c0_22, %c0_23] : memref<8x1xf32, #tpu.memory_space<vmem>>, vector<8x1xf32>
    %22 = vector.broadcast %21 : vector<8x1xf32> to vector<8x112xf32>
    %23 = arith.addf %17, %22 : vector<8x112xf32>
    %cst_24 = arith.constant 0.000000e+00 : f32
    %24 = vector.broadcast %cst_24 : f32 to vector<8x112xf32>
    %25 = arith.subf %24, %23 : vector<8x112xf32>
    %26 = math.exp %25 : vector<8x112xf32>
    %cst_25 = arith.constant 1.000000e+00 : f32
    %27 = vector.broadcast %cst_25 : f32 to vector<8x112xf32>
    %28 = arith.addf %27, %26 : vector<8x112xf32>
    %29 = tpu.reciprocal %28 : vector<8x112xf32> -> vector<8x112xf32>
    %30 = arith.mulf %20, %29 : vector<8x112xf32>
    %c0_26 = arith.constant 0 : index
    %c0_27 = arith.constant 0 : index
    %c0_28 = arith.constant 0 : index
    %c0_29 = arith.constant 0 : index
    %31 = vector.load %arg7[%c0_26, %c0_27, %c0_28, %c0_29] : memref<1x1x8x112xf32, #tpu.memory_space<vmem>>, vector<1x1x8x112xf32>
    %32 = vector.shape_cast %31 : vector<1x1x8x112xf32> to vector<8x112xf32>
    %33 = vector.shape_cast %30 : vector<8x112xf32> to vector<1x1x8x112xf32>
    tpu.vector_store %arg7[%c0_26, %c0_27, %c0_28, %c0_29], %33 {strides = array<i32>} : memref<1x1x8x112xf32, #tpu.memory_space<vmem>>, vector<1x1x8x112xf32>,
    return
  }
  func.func @transform_0(%arg0: i32, %arg1: i32) -> (i32, i32, i32, i32) {
    %c0_i32 = arith.constant 0 : i32
    %c0_i32_0 = arith.constant 0 : i32
    %c0_i32_1 = arith.constant 0 : i32
    return %arg0, %arg1, %c0_i32, %c0_i32_0 : i32, i32, i32, i32
  }
  func.func @transform_1(%arg0: i32, %arg1: i32) -> (i32, i32, i32) {
    %c0_i32 = arith.constant 0 : i32
    %c0_i32_0 = arith.constant 0 : i32
    %c0_i32_1 = arith.constant 0 : i32
    %c0_i32_2 = arith.constant 0 : i32
    return %c0_i32, %c0_i32_0, %c0_i32_1 : i32, i32, i32
  }
  func.func @transform_2(%arg0: i32, %arg1: i32) -> (i32, i32, i32) {
    %c0_i32 = arith.constant 0 : i32
    %c0_i32_0 = arith.constant 0 : i32
    %c0_i32_1 = arith.constant 0 : i32
    %c0_i32_2 = arith.constant 0 : i32
    return %c0_i32, %c0_i32_0, %c0_i32_1 : i32, i32, i32
  }
  func.func @transform_3(%arg0: i32, %arg1: i32) -> (i32, i32) {
    %c0_i32 = arith.constant 0 : i32
    %c0_i32_0 = arith.constant 0 : i32
    %c0_i32_1 = arith.constant 0 : i32
    return %c0_i32, %c0_i32_0 : i32, i32
  }
  func.func @transform_4(%arg0: i32, %arg1: i32) -> (i32, i32) {
    %c0_i32 = arith.constant 0 : i32
    %c0_i32_0 = arith.constant 0 : i32
    %c0_i32_1 = arith.constant 0 : i32
    return %c0_i32, %c0_i32_0 : i32, i32
  }
  func.func @transform_5(%arg0: i32, %arg1: i32) -> (i32, i32, i32, i32) {
    %c0_i32 = arith.constant 0 : i32
    %c0_i32_0 = arith.constant 0 : i32
    %c0_i32_1 = arith.constant 0 : i32
    return %arg0, %arg1, %c0_i32, %c0_i32_0 : i32, i32, i32, i32
  }
}

</mosaic_0001>

<llo_original>
// kernel: tpu_custom_call.1
$region0: #{tpu_custom_call.1}
  #allocation0 [shape = 'u32[]', space=smem, size = 0x4, offset = 0x4, fixed_abs, tag = 'smem constant byte address 0x4 - core index']
  #allocation1 [shape = 'u32[144,128]{1,0:T(1,128)}', space=vmem, size = 0x12000, scoped, tag = 'internal scratch']
  %s0 = inlined_call_operand.vmem [shape: f32[2,1,4,128], index: 0, kind: input, shape index: {}]
  %s1 = inlined_call_operand.vmem [shape: f32[2,8,4], index: 1, kind: input, shape index: {}]
  %s2 = inlined_call_operand.vmem [shape: f32[2,8,4], index: 2, kind: input, shape index: {}]
  %s3 = inlined_call_operand.vmem [shape: f32[8,1], index: 3, kind: input, shape index: {}]
  %s4 = inlined_call_operand.vmem [shape: f32[8,1], index: 4, kind: input, shape index: {}]
  %s5 = inlined_call_operand.hbm [shape: f32[2,1,8,112], index: 5, kind: output, shape index: {}]
  %s6 = sld [smem:[#allocation0]]
  $region53: #{tpu_custom_call.1} parent=0
    _
  %s8 = ssub.s32 1, %s6
  %s9 = scalar_select 0, %s8, %s6
  $region1: #{tpu_custom_call.1} parent=0
    #allocation2 [shape = 'u8[8192]{0}', space=vmem, size = 0x2000, scoped, tag = 'output window, operand 0']
    #allocation3 [shape = 's32[2]{0}', space=sflag, size = 0x8, scoped, tag = 'scoped memory for tpu_custom_call.1']
    %10 = vsyncpa [#allocation3], 0
    %s11 = scalar_lea.sflag [#allocation3], 1
    %12 = vsyncpa %s11, 0
    loop: start=0, step=1, limit=4
    $region2: #{tpu_custom_call.1} parent=1 // loop_pre_header
      _
    $region3: #{tpu_custom_call.1} parent=1 // loop_header
      %s14 = sphi 0, %s18
      %p15 = scmp.ge.s32.totalorder %s14, 4
      %s21 = sphi 0, %s33
      %s22 = sphi 0, %s29
      %s23 = sphi 0, %s21
      %s24 = sphi 0, %s22
      %s25 = sphi 0, %s23
      %s26 = sphi 0, %s24
      %s38 = sphi 0, %s40
      %s41 = sphi 0, %s38
      %s42 = sphi 0, %s41
      %s58 = sphi 0, %s42
      %s62 = sphi 0, %s62
      %s64 = sphi 0, %s62
      %s65 = sphi 0, %s64
      %s79 = sphi 0, %s65
      %s83 = sphi 0, %s83
      %s85 = sphi 0, %s83
      %s86 = sphi 0, %s85
      %s100 = sphi 0, %s86
      %s104 = sphi 0, %s104
      %s106 = sphi 0, %s104
      %s107 = sphi 0, %s106
      %s121 = sphi 0, %s107
      %s125 = sphi 0, %s125
      %s127 = sphi 0, %s125
      %s128 = sphi 0, %s127
      %s142 = sphi 0, %s128
      %s150 = sphi 0, %s152
      %s153 = sphi 0, %s150
      %s154 = sphi 0, %s153
      %s170 = sphi 0, %s154
    $region4: #{tpu_custom_call.1} parent=1 // loop_header_branch
      %17 = sbr.rel (%p15) target = $region8
    $region5: #{tpu_custom_call.1} parent=1 // loop_body
      %s19 = ssub.s32 %s14, 1
      %s20 = ssub.s32 %s14, 2
      %s27 = sadd.s32 1, %s22
      %p28 = scmp.ge.s32.totalorder %s27, 1
      %s29 = scalar_select %p28, 0, %s27
      %s30 = sadd.s32 1, %s21
      %s31 = scalar_select %p28, %s30, %s21
      %p32 = scmp.ge.s32.totalorder %s31, 2
      %s33 = scalar_select %p32, 0, %s31
      %s34 = ssub.s32 %s21, %s33
      %s35 = ssub.s32 %s22, %s29
      %s36 = sor.u32 %s34, %s35
      %p37 = scmp.eq.s32.totalorder %s36, 0
      %s39 = sadd.s32 %s38, 1
      %s40 = scalar_select %p37, %s38, %s39
      %p43 = pneg %p37
      %p44 = scmp.eq.s32.totalorder %s14, 1
      %p45 = por %p43, %p44
      %p46 = scmp.ne.s32.totalorder %s38, %s41
      %p47 = scmp.eq.s32.totalorder %s14, 0
      %p48 = por %p46, %p47
      %p49 = scmp.ne.s32.totalorder %s38, %s41
      %p50 = scmp.eq.s32.totalorder %s19, 1
      %p51 = por %p49, %p50
      %p52 = scmp.ne.s32.totalorder %s41, %s42
      %p53 = scmp.eq.s32.totalorder %s19, 0
      %p54 = por %p52, %p53
      %p55 = scmp.ne.s32.totalorder %s41, %s42
      %p56 = scmp.eq.s32.totalorder %s20, 1
      %p57 = por %p55, %p56
      %p59 = scmp.ne.s32.totalorder %s42, %s58
      %p60 = scmp.eq.s32.totalorder %s20, 0
      %p61 = por %p59, %p60
      %s63 = sadd.s32 %s62, 1
      %p66 = scmp.eq.s32.totalorder %s14, 1
      %p67 = scmp.ne.s32.totalorder %s62, %s64
      %p68 = scmp.eq.s32.totalorder %s14, 0
      %p69 = por %p67, %p68
      %p70 = scmp.ne.s32.totalorder %s62, %s64
      %p71 = scmp.eq.s32.totalorder %s19, 1
      %p72 = por %p70, %p71
      %p73 = scmp.ne.s32.totalorder %s64, %s65
      %p74 = scmp.eq.s32.totalorder %s19, 0
      %p75 = por %p73, %p74
      %p76 = scmp.ne.s32.totalorder %s64, %s65
      %p77 = scmp.eq.s32.totalorder %s20, 1
      %p78 = por %p76, %p77
      %p80 = scmp.ne.s32.totalorder %s65, %s79
      %p81 = scmp.eq.s32.totalorder %s20, 0
      %p82 = por %p80, %p81
      %s84 = sadd.s32 %s83, 1
      %p87 = scmp.eq.s32.totalorder %s14, 1
      %p88 = scmp.ne.s32.totalorder %s83, %s85
      %p89 = scmp.eq.s32.totalorder %s14, 0
      %p90 = por %p88, %p89
      %p91 = scmp.ne.s32.totalorder %s83, %s85
      %p92 = scmp.eq.s32.totalorder %s19, 1
      %p93 = por %p91, %p92
      %p94 = scmp.ne.s32.totalorder %s85, %s86
      %p95 = scmp.eq.s32.totalorder %s19, 0
      %p96 = por %p94, %p95
      %p97 = scmp.ne.s32.totalorder %s85, %s86
      %p98 = scmp.eq.s32.totalorder %s20, 1
      %p99 = por %p97, %p98
      %p101 = scmp.ne.s32.totalorder %s86, %s100
      %p102 = scmp.eq.s32.totalorder %s20, 0
      %p103 = por %p101, %p102
      %s105 = sadd.s32 %s104, 1
      %p108 = scmp.eq.s32.totalorder %s14, 1
      %p109 = scmp.ne.s32.totalorder %s104, %s106
      %p110 = scmp.eq.s32.totalorder %s14, 0
      %p111 = por %p109, %p110
      %p112 = scmp.ne.s32.totalorder %s104, %s106
      %p113 = scmp.eq.s32.totalorder %s19, 1
      %p114 = por %p112, %p113
      %p115 = scmp.ne.s32.totalorder %s106, %s107
      %p116 = scmp.eq.s32.totalorder %s19, 0
      %p117 = por %p115, %p116
      %p118 = scmp.ne.s32.totalorder %s106, %s107
      %p119 = scmp.eq.s32.totalorder %s20, 1
      %p120 = por %p118, %p119
      %p122 = scmp.ne.s32.totalorder %s107, %s121
      %p123 = scmp.eq.s32.totalorder %s20, 0
      %p124 = por %p122, %p123
      %s126 = sadd.s32 %s125, 1
      %p129 = scmp.eq.s32.totalorder %s14, 1
      %p130 = scmp.ne.s32.totalorder %s125, %s127
      %p131 = scmp.eq.s32.totalorder %s14, 0
      %p132 = por %p130, %p131
      %p133 = scmp.ne.s32.totalorder %s125, %s127
      %p134 = scmp.eq.s32.totalorder %s19, 1
      %p135 = por %p133, %p134
      %p136 = scmp.ne.s32.totalorder %s127, %s128
      %p137 = scmp.eq.s32.totalorder %s19, 0
      %p138 = por %p136, %p137
      %p139 = scmp.ne.s32.totalorder %s127, %s128
      %p140 = scmp.eq.s32.totalorder %s20, 1
      %p141 = por %p139, %p140
      %p143 = scmp.ne.s32.totalorder %s128, %s142
      %p144 = scmp.eq.s32.totalorder %s20, 0
      %p145 = por %p143, %p144
      %s146 = ssub.s32 %s21, %s33
      %s147 = ssub.s32 %s22, %s29
      %s148 = sor.u32 %s146, %s147
      %p149 = scmp.eq.s32.totalorder %s148, 0
      %s151 = sadd.s32 %s150, 1
      %s152 = scalar_select %p149, %s150, %s151
      %p155 = pneg %p149
      %p156 = scmp.eq.s32.totalorder %s14, 1
      %p157 = por %p155, %p156
      %p158 = scmp.ne.s32.totalorder %s150, %s153
      %p159 = scmp.eq.s32.totalorder %s14, 0
      %p160 = por %p158, %p159
      %p161 = scmp.ne.s32.totalorder %s150, %s153
      %p162 = scmp.eq.s32.totalorder %s19, 1
      %p163 = por %p161, %p162
      %p164 = scmp.ne.s32.totalorder %s153, %s154
      %p165 = scmp.eq.s32.totalorder %s19, 0
      %p166 = por %p164, %p165
      %p167 = scmp.ne.s32.totalorder %s153, %s154
      %p168 = scmp.eq.s32.totalorder %s20, 1
      %p169 = por %p167, %p168
      %p171 = scmp.ne.s32.totalorder %s154, %s170
      %p172 = scmp.eq.s32.totalorder %s20, 0
      %p173 = por %p171, %p172
      %p174 = scmp.le.s32.totalorder 1, %s14
      %p175 = scmp.lt.s32.totalorder %s14, 3
      %p176 = pnand %p174, %p175
      %p177 = pneg %p176
      // Predicated region
      $region9: #{tpu_custom_call.1} parent=5 // pred_check
        _
      $region10: #{tpu_custom_call.1} parent=5 // pred_check_branch
        %179 = sbr.rel (%p176) target = $region12
      $region11: #{tpu_custom_call.1} parent=5 // pred_region
        %s180 = ssub.s32 %s14, 1
        // Predicated region
        $region13: #{tpu_custom_call.1} parent=11 // pred_check
          %p181 = pneg %p75
        $region14: #{tpu_custom_call.1} parent=11 // pred_check_branch
          %183 = sbr.rel (%p181) target = $region16
        $region15: #{tpu_custom_call.1} parent=11 // pred_region
          _
        $region16: #{tpu_custom_call.1} parent=11 // pred_fallthru
          _
        // Predicated region
        $region17: #{tpu_custom_call.1} parent=11 // pred_check
          %p184 = pneg %p96
        $region18: #{tpu_custom_call.1} parent=11 // pred_check_branch
          %186 = sbr.rel (%p184) target = $region20
        $region19: #{tpu_custom_call.1} parent=11 // pred_region
          _
        $region20: #{tpu_custom_call.1} parent=11 // pred_fallthru
          _
        // Predicated region
        $region21: #{tpu_custom_call.1} parent=11 // pred_check
          %p187 = pneg %p117
        $region22: #{tpu_custom_call.1} parent=11 // pred_check_branch
          %189 = sbr.rel (%p187) target = $region24
        $region23: #{tpu_custom_call.1} parent=11 // pred_region
          _
        $region24: #{tpu_custom_call.1} parent=11 // pred_fallthru
          _
        // Predicated region
        $region25: #{tpu_custom_call.1} parent=11 // pred_check
          %p190 = pneg %p138
        $region26: #{tpu_custom_call.1} parent=11 // pred_check_branch
          %192 = sbr.rel (%p190) target = $region28
        $region27: #{tpu_custom_call.1} parent=11 // pred_region
          _
        $region28: #{tpu_custom_call.1} parent=11 // pred_fallthru
          _
      $region12: #{tpu_custom_call.1} parent=5 // pred_fallthru
        _
      %p193 = scmp.lt.s32.totalorder %s14, 2
      // Predicated region
      $region29: #{tpu_custom_call.1} parent=5 // pred_check
        %p194 = pneg %p193
      $region30: #{tpu_custom_call.1} parent=5 // pred_check_branch
        %196 = sbr.rel (%p194) target = $region32
      $region31: #{tpu_custom_call.1} parent=5 // pred_region
        // Predicated region
        $region33: #{tpu_custom_call.1} parent=31 // pred_check
          %p197 = pneg %p48
        $region34: #{tpu_custom_call.1} parent=31 // pred_check_branch
          %199 = sbr.rel (%p197) target = $region36
        $region35: #{tpu_custom_call.1} parent=31 // pred_region
          %p200 = scmp.lt.s32.totalorder %s21, 1
          %s201 = scalar_select %p200, %s21, 1
          %p202 = scmp.lt.s32.totalorder %s22, 0
          %s203 = scalar_select %p202, %s22, 0
          %s204 = sadd.s32 %s203, %s201
          %s205 = smul.addr %s204, 4
          %s206 = scalar_lea.vmem %s0, %s205
        $region36: #{tpu_custom_call.1} parent=31 // pred_fallthru
          _
      $region32: #{tpu_custom_call.1} parent=5 // pred_fallthru
        _
      %p207 = scmp.le.s32.totalorder 1, %s14
      %p208 = scmp.lt.s32.totalorder %s14, 3
      %p209 = pnand %p207, %p208
      %p210 = pneg %p209
      // Predicated region
      $region37: #{tpu_custom_call.1} parent=5 // pred_check
        _
      $region38: #{tpu_custom_call.1} parent=5 // pred_check_branch
        %212 = sbr.rel (%p209) target = $region40
      $region39: #{tpu_custom_call.1} parent=5 // pred_region
        %s213 = ssub.s32 %s14, 1
        %p214 = scmp.lt.s32.totalorder %s23, 1
        %s215 = scalar_select %p214, %s23, 1
        %p216 = scmp.lt.s32.totalorder %s24, 0
        %s217 = scalar_select %p216, %s24, 0
        %s218 = sadd.s32 %s217, %s215
        %s219 = smul.addr %s218, 4
        %s220 = scalar_lea.vmem %s0, %s219
        %p221 = pneg %p54
        %p222 = pneg %p51
        %p223 = pneg %p75
        %p224 = pneg %p72
        %p225 = pneg %p96
        %p226 = pneg %p93
        %p227 = pneg %p117
        %p228 = pneg %p114
        %p229 = pneg %p138
        %p230 = pneg %p135
        %p231 = pneg %p166
        %p232 = pneg %p163
        %s233 = sand.u32 %s153, 1
        %s234 = scalar_lea.sflag [#allocation3], %s233
        %s235 = sand.u32 %s153, 1
        %s236 = smul.addr %s235, 8
        %s237 = scalar_lea.vmem [#allocation2], %s236
        %p238 = scmp.lt.s32.totalorder %s23, 1
        %s239 = scalar_select %p238, %s23, 1
        %p240 = scmp.lt.s32.totalorder %s24, 0
        %s241 = scalar_select %p240, %s24, 0
        %s242 = sadd.s32 %s241, %s239
        %s243 = smul.addr %s242, 4
        %s244 = scalar_lea.vmem %s0, %s243
        %v245 = vld [vmem:[%s244] sm:$0xf]
        %v246 = vld [vmem:[%s1] sm:$0xff]
        %v247 = vld [vmem:[%s2] sm:$0xff]
        %s248 = scalar_lea.vmem %s1, 8
        %v249 = vld [vmem:[%s248] sm:$0xff]
        %251 = vrot.lane.b32.xlu0 %v245, 112
        %v252 = vpop.permute.xlu0 %251
        %vm253 = vcmask 31744
        %v255 = vsel %vm253, %v249, 0
        %vm257 = vcmask 1043456
        %v258 = vsel %vm257, %v252, 0
        %260 = vmatprep.subr.mxu0 0.0
        %261 = vmatpush1.msra.mxu0 %v258
        %262 = vmatprep.subr.mxu0 0.0
        %263 = vmatpush1.msra.mxu0 0.0
        %264 = vmatprep.subr.mxu0 0.0
        %265 = vmatpush1.msra.mxu0 0.0
        %266 = vmatprep.subr.mxu0 0.0
        %267 = vmatpush1.msra.mxu0 0.0
        %268 = vmatprep.subr.mxu0 0.0
        %269 = vmatpush1.msra.mxu0 0.0
        %270 = vmatprep.subr.mxu0 0.0
        %271 = vmatpush1.msra.mxu0 0.0
        %272 = vmatprep.subr.mxu0 0.0
        %273 = vmatpush1.msra.mxu0 0.0
        %274 = vmatprep.subr.mxu0 0.0
        %275 = vmatpush1.msra.mxu0 0.0
        %276 = vmatprep.subr.mxu0 0.0
        %277 = vmatpush1.msra.mxu0 0.0
        %278 = vmatprep.subr.mxu0 0.0
        %279 = vmatpush1.msra.mxu0 0.0
        %280 = vmatprep.subr.mxu0 0.0
        %281 = vmatpush1.msra.mxu0 0.0
        %282 = vmatprep.subr.mxu0 0.0
        %283 = vmatpush1.msra.mxu0 0.0
        %284 = vmatprep.subr.mxu0 0.0
        %285 = vmatpush1.msra.mxu0 0.0
        %286 = vmatprep.subr.mxu0 0.0
        %287 = vmatpush1.msra.mxu0 0.0
        %288 = vmatprep.subr.mxu0 0.0
        %289 = vmatpush1.msra.mxu0 0.0
        %290 = vmatprep.subr.mxu0 0.0
        %291 = vmatpush1.msra.mxu0 0.0
        %292 = vmatprep.subr.mxu0 0.0
        %293 = vmatpush1.msra.mxu0 0.0
        %294 = vmatprep.subr.mxu0 0.0
        %295 = vmatpush1.msra.mxu0 0.0
        %296 = vmatprep.subr.mxu0 0.0
        %297 = vmatpush1.msra.mxu0 0.0
        %298 = vmatprep.subr.mxu0 0.0
        %299 = vmatpush1.msra.mxu0 0.0
        %300 = vmatprep.subr.mxu0 0.0
        %301 = vmatpush1.msra.mxu0 0.0
        %302 = vmatprep.subr.mxu0 0.0
        %303 = vmatpush1.msra.mxu0 0.0
        %304 = vmatprep.subr.mxu0 0.0
        %305 = vmatpush1.msra.mxu0 0.0
        %306 = vmatprep.subr.mxu0 0.0
        %307 = vmatpush1.msra.mxu0 0.0
        %308 = vmatprep.subr.mxu0 0.0
        %309 = vmatpush1.msra.mxu0 0.0
        %310 = vmatprep.subr.mxu0 0.0
        %311 = vmatpush1.msra.mxu0 0.0
        %312 = vmatprep.subr.mxu0 0.0
        %313 = vmatpush1.msra.mxu0 0.0
        %314 = vmatprep.subr.mxu0 0.0
        %315 = vmatpush1.msra.mxu0 0.0
        %316 = vmatprep.subr.mxu0 0.0
        %317 = vmatpush1.msra.mxu0 0.0
        %318 = vmatprep.subr.mxu0 0.0
        %319 = vmatpush1.msra.mxu0 0.0
        %320 = vmatprep.subr.mxu0 0.0
        %321 = vmatpush1.msra.mxu0 0.0
        %322 = vmatprep.subr.mxu0 0.0
        %323 = vmatpush1.msra.mxu0 0.0
        %324 = vmatprep.mubr.f32.mxu0 0.0
        %325 = vmatmul.mubr.f32.gmra.mrb[0].mxu0 %v255
        %v326 = vpop.f32.mrb[0].mxu0
        %v327 = vadd.f32 0.0, %v326
        %v328 = vpop.f32.mrb[0].mxu0
        %329 = vdwg.mxu0
        %v331 = vsel %vm253, %v246, 0
        %v333 = vsel %vm257, %v245, 0
        %335 = vmatprep.subr.mxu0 0.0
        %336 = vmatpush1.msra.mxu0 %v333
        %337 = vmatprep.subr.mxu0 0.0
        %338 = vmatpush1.msra.mxu0 0.0
        %339 = vmatprep.subr.mxu0 0.0
        %340 = vmatpush1.msra.mxu0 0.0
        %341 = vmatprep.subr.mxu0 0.0
        %342 = vmatpush1.msra.mxu0 0.0
        %343 = vmatprep.subr.mxu0 0.0
        %344 = vmatpush1.msra.mxu0 0.0
        %345 = vmatprep.subr.mxu0 0.0
        %346 = vmatpush1.msra.mxu0 0.0
        %347 = vmatprep.subr.mxu0 0.0
        %348 = vmatpush1.msra.mxu0 0.0
        %349 = vmatprep.subr.mxu0 0.0
        %350 = vmatpush1.msra.mxu0 0.0
        %351 = vmatprep.subr.mxu0 0.0
        %352 = vmatpush1.msra.mxu0 0.0
        %353 = vmatprep.subr.mxu0 0.0
        %354 = vmatpush1.msra.mxu0 0.0
        %355 = vmatprep.subr.mxu0 0.0
        %356 = vmatpush1.msra.mxu0 0.0
        %357 = vmatprep.subr.mxu0 0.0
        %358 = vmatpush1.msra.mxu0 0.0
        %359 = vmatprep.subr.mxu0 0.0
        %360 = vmatpush1.msra.mxu0 0.0
        %361 = vmatprep.subr.mxu0 0.0
        %362 = vmatpush1.msra.mxu0 0.0
        %363 = vmatprep.subr.mxu0 0.0
        %364 = vmatpush1.msra.mxu0 0.0
        %365 = vmatprep.subr.mxu0 0.0
        %366 = vmatpush1.msra.mxu0 0.0
        %367 = vmatprep.subr.mxu0 0.0
        %368 = vmatpush1.msra.mxu0 0.0
        %369 = vmatprep.subr.mxu0 0.0
        %370 = vmatpush1.msra.mxu0 0.0
        %371 = vmatprep.subr.mxu0 0.0
        %372 = vmatpush1.msra.mxu0 0.0
        %373 = vmatprep.subr.mxu0 0.0
        %374 = vmatpush1.msra.mxu0 0.0
        %375 = vmatprep.subr.mxu0 0.0
        %376 = vmatpush1.msra.mxu0 0.0
        %377 = vmatprep.subr.mxu0 0.0
        %378 = vmatpush1.msra.mxu0 0.0
        %379 = vmatprep.subr.mxu0 0.0
        %380 = vmatpush1.msra.mxu0 0.0
        %381 = vmatprep.subr.mxu0 0.0
        %382 = vmatpush1.msra.mxu0 0.0
        %383 = vmatprep.subr.mxu0 0.0
        %384 = vmatpush1.msra.mxu0 0.0
        %385 = vmatprep.subr.mxu0 0.0
        %386 = vmatpush1.msra.mxu0 0.0
        %387 = vmatprep.subr.mxu0 0.0
        %388 = vmatpush1.msra.mxu0 0.0
        %389 = vmatprep.subr.mxu0 0.0
        %390 = vmatpush1.msra.mxu0 0.0
        %391 = vmatprep.subr.mxu0 0.0
        %392 = vmatpush1.msra.mxu0 0.0
        %393 = vmatprep.subr.mxu0 0.0
        %394 = vmatpush1.msra.mxu0 0.0
        %395 = vmatprep.subr.mxu0 0.0
        %396 = vmatpush1.msra.mxu0 0.0
        %397 = vmatprep.subr.mxu0 0.0
        %398 = vmatpush1.msra.mxu0 0.0
        %399 = vmatprep.mubr.f32.mxu0 0.0
        %400 = vmatmul.mubr.f32.gmra.mrb[0].mxu0 %v331
        %v401 = vpop.f32.mrb[0].mxu0
        %v402 = vadd.f32 %v327, %v401
        %v403 = vpop.f32.mrb[0].mxu0
        %404 = vdwg.mxu0
        %s405 = scalar_lea.vmem %s2, 8
        %v406 = vld [vmem:[%s405] sm:$0xff]
        %v408 = vsel %vm253, %v406, 0
        %410 = vmatprep.subr.mxu0 0.0
        %411 = vmatpush1.msra.mxu0 %v258
        %412 = vmatprep.subr.mxu0 0.0
        %413 = vmatpush1.msra.mxu0 0.0
        %414 = vmatprep.subr.mxu0 0.0
        %415 = vmatpush1.msra.mxu0 0.0
        %416 = vmatprep.subr.mxu0 0.0
        %417 = vmatpush1.msra.mxu0 0.0
        %418 = vmatprep.subr.mxu0 0.0
        %419 = vmatpush1.msra.mxu0 0.0
        %420 = vmatprep.subr.mxu0 0.0
        %421 = vmatpush1.msra.mxu0 0.0
        %422 = vmatprep.subr.mxu0 0.0
        %423 = vmatpush1.msra.mxu0 0.0
        %424 = vmatprep.subr.mxu0 0.0
        %425 = vmatpush1.msra.mxu0 0.0
        %426 = vmatprep.subr.mxu0 0.0
        %427 = vmatpush1.msra.mxu0 0.0
        %428 = vmatprep.subr.mxu0 0.0
        %429 = vmatpush1.msra.mxu0 0.0
        %430 = vmatprep.subr.mxu0 0.0
        %431 = vmatpush1.msra.mxu0 0.0
        %432 = vmatprep.subr.mxu0 0.0
        %433 = vmatpush1.msra.mxu0 0.0
        %434 = vmatprep.subr.mxu0 0.0
        %435 = vmatpush1.msra.mxu0 0.0
        %436 = vmatprep.subr.mxu0 0.0
        %437 = vmatpush1.msra.mxu0 0.0
        %438 = vmatprep.subr.mxu0 0.0
        %439 = vmatpush1.msra.mxu0 0.0
        %440 = vmatprep.subr.mxu0 0.0
        %441 = vmatpush1.msra.mxu0 0.0
        %442 = vmatprep.subr.mxu0 0.0
        %443 = vmatpush1.msra.mxu0 0.0
        %444 = vmatprep.subr.mxu0 0.0
        %445 = vmatpush1.msra.mxu0 0.0
        %446 = vmatprep.subr.mxu0 0.0
        %447 = vmatpush1.msra.mxu0 0.0
        %448 = vmatprep.subr.mxu0 0.0
        %449 = vmatpush1.msra.mxu0 0.0
        %450 = vmatprep.subr.mxu0 0.0
        %451 = vmatpush1.msra.mxu0 0.0
        %452 = vmatprep.subr.mxu0 0.0
        %453 = vmatpush1.msra.mxu0 0.0
        %454 = vmatprep.subr.mxu0 0.0
        %455 = vmatpush1.msra.mxu0 0.0
        %456 = vmatprep.subr.mxu0 0.0
        %457 = vmatpush1.msra.mxu0 0.0
        %458 = vmatprep.subr.mxu0 0.0
        %459 = vmatpush1.msra.mxu0 0.0
        %460 = vmatprep.subr.mxu0 0.0
        %461 = vmatpush1.msra.mxu0 0.0
        %462 = vmatprep.subr.mxu0 0.0
        %463 = vmatpush1.msra.mxu0 0.0
        %464 = vmatprep.subr.mxu0 0.0
        %465 = vmatpush1.msra.mxu0 0.0
        %466 = vmatprep.subr.mxu0 0.0
        %467 = vmatpush1.msra.mxu0 0.0
        %468 = vmatprep.subr.mxu0 0.0
        %469 = vmatpush1.msra.mxu0 0.0
        %470 = vmatprep.subr.mxu0 0.0
        %471 = vmatpush1.msra.mxu0 0.0
        %472 = vmatprep.subr.mxu0 0.0
        %473 = vmatpush1.msra.mxu0 0.0
        %474 = vmatprep.mubr.f32.mxu0 0.0
        %475 = vmatmul.mubr.f32.gmra.mrb[0].mxu0 %v408
        %v476 = vpop.f32.mrb[0].mxu0
        %v477 = vadd.f32 0.0, %v476
        %v478 = vpop.f32.mrb[0].mxu0
        %479 = vdwg.mxu0
        %v481 = vsel %vm253, %v247, 0
        %483 = vmatprep.subr.mxu0 0.0
        %484 = vmatpush1.msra.mxu0 %v333
        %485 = vmatprep.subr.mxu0 0.0
        %486 = vmatpush1.msra.mxu0 0.0
        %487 = vmatprep.subr.mxu0 0.0
        %488 = vmatpush1.msra.mxu0 0.0
        %489 = vmatprep.subr.mxu0 0.0
        %490 = vmatpush1.msra.mxu0 0.0
        %491 = vmatprep.subr.mxu0 0.0
        %492 = vmatpush1.msra.mxu0 0.0
        %493 = vmatprep.subr.mxu0 0.0
        %494 = vmatpush1.msra.mxu0 0.0
        %495 = vmatprep.subr.mxu0 0.0
        %496 = vmatpush1.msra.mxu0 0.0
        %497 = vmatprep.subr.mxu0 0.0
        %498 = vmatpush1.msra.mxu0 0.0
        %499 = vmatprep.subr.mxu0 0.0
        %500 = vmatpush1.msra.mxu0 0.0
        %501 = vmatprep.subr.mxu0 0.0
        %502 = vmatpush1.msra.mxu0 0.0
        %503 = vmatprep.subr.mxu0 0.0
        %504 = vmatpush1.msra.mxu0 0.0
        %505 = vmatprep.subr.mxu0 0.0
        %506 = vmatpush1.msra.mxu0 0.0
        %507 = vmatprep.subr.mxu0 0.0
        %508 = vmatpush1.msra.mxu0 0.0
        %509 = vmatprep.subr.mxu0 0.0
        %510 = vmatpush1.msra.mxu0 0.0
        %511 = vmatprep.subr.mxu0 0.0
        %512 = vmatpush1.msra.mxu0 0.0
        %513 = vmatprep.subr.mxu0 0.0
        %514 = vmatpush1.msra.mxu0 0.0
        %515 = vmatprep.subr.mxu0 0.0
        %516 = vmatpush1.msra.mxu0 0.0
        %517 = vmatprep.subr.mxu0 0.0
        %518 = vmatpush1.msra.mxu0 0.0
        %519 = vmatprep.subr.mxu0 0.0
        %520 = vmatpush1.msra.mxu0 0.0
        %521 = vmatprep.subr.mxu0 0.0
        %522 = vmatpush1.msra.mxu0 0.0
        %523 = vmatprep.subr.mxu0 0.0
        %524 = vmatpush1.msra.mxu0 0.0
        %525 = vmatprep.subr.mxu0 0.0
        %526 = vmatpush1.msra.mxu0 0.0
        %527 = vmatprep.subr.mxu0 0.0
        %528 = vmatpush1.msra.mxu0 0.0
        %529 = vmatprep.subr.mxu0 0.0
        %530 = vmatpush1.msra.mxu0 0.0
        %531 = vmatprep.subr.mxu0 0.0
        %532 = vmatpush1.msra.mxu0 0.0
        %533 = vmatprep.subr.mxu0 0.0
        %534 = vmatpush1.msra.mxu0 0.0
        %535 = vmatprep.subr.mxu0 0.0
        %536 = vmatpush1.msra.mxu0 0.0
        %537 = vmatprep.subr.mxu0 0.0
        %538 = vmatpush1.msra.mxu0 0.0
        %539 = vmatprep.subr.mxu0 0.0
        %540 = vmatpush1.msra.mxu0 0.0
        %541 = vmatprep.subr.mxu0 0.0
        %542 = vmatpush1.msra.mxu0 0.0
        %543 = vmatprep.subr.mxu0 0.0
        %544 = vmatpush1.msra.mxu0 0.0
        %545 = vmatprep.subr.mxu0 0.0
        %546 = vmatpush1.msra.mxu0 0.0
        %547 = vmatprep.mubr.f32.mxu0 0.0
        %548 = vmatmul.mubr.f32.gmra.mrb[0].mxu0 %v481
        %v549 = vpop.f32.mrb[0].mxu0
        %v550 = vadd.f32 %v477, %v549
        %v551 = vpop.f32.mrb[0].mxu0
        %552 = vdwg.mxu0
        %v553 = vld [vmem:[%s3] sm:$0xff]
        %555 = vset.pattern.permute.xlu0 0
        %556 = vperm.xlu0 %555, %v553
        %v557 = vpop.permute.xlu0 %556
        %v559 = vadd.f32 %v402, %v557
        %v560 = vld [vmem:[%s4] sm:$0xff]
        %562 = vset.pattern.permute.xlu0 0
        %563 = vperm.xlu0 %562, %v560
        %v564 = vpop.permute.xlu0 %563
        %v566 = vadd.f32 %v550, %v564
        %v567 = vsub.f32 0.0, %v566
        %v568 = vmul.f32 %v567, 1.442695
        %v569 = vpow.pop %v568
        %v570 = vadd.f32 %v569, 1.0
        %v571 = vrcp.pop %v570
        %v572 = vmul.f32 %v559, %v571
        %vm573 = vcmask 916480
        %574 = vst.msk [vmem:[%s237] sm:$0xff] %vm573, %v572
        %s575 = sand.u32 %s153, 1
        %s576 = scalar_lea.sflag [#allocation3], %s575
        %s577 = sand.u32 %s153, 1
        %s578 = smul.addr %s577, 8
        %s579 = scalar_lea.vmem [#allocation2], %s578
        // Predicated region
        $region41: #{tpu_custom_call.1} parent=39 // pred_check
          %p580 = pneg %p163
        $region42: #{tpu_custom_call.1} parent=39 // pred_check_branch
          %582 = sbr.rel (%p580) target = $region44
        $region43: #{tpu_custom_call.1} parent=39 // pred_region
          %s584 = ssub.s32 128, 128
          %585 = vsyncadd %s576, %s584
          %s586 = sadd.s32 %s24, %s23
          %s587 = smul.addr %s586, 128
          %s588 = scalar_lea.hbm %s5, %s587
          %s590 = sshll.u32 %s579, 4
          %s591 = int_to_ptr.vmem [resolvable:$true] %s590
          %593 = dma.vmem_to_hbm [thread:$0]  %s591, 128, %s588, %s576
        $region44: #{tpu_custom_call.1} parent=39 // pred_fallthru
          _
      $region40: #{tpu_custom_call.1} parent=5 // pred_fallthru
        _
      %p594 = scmp.le.s32.totalorder 2, %s14
      // Predicated region
      $region45: #{tpu_custom_call.1} parent=5 // pred_check
        %p595 = pneg %p594
      $region46: #{tpu_custom_call.1} parent=5 // pred_check_branch
        %597 = sbr.rel (%p595) target = $region48
      $region47: #{tpu_custom_call.1} parent=5 // pred_region
        %s598 = ssub.s32 %s14, 2
        // Predicated region
        $region49: #{tpu_custom_call.1} parent=47 // pred_check
          %p599 = pneg %p169
        $region50: #{tpu_custom_call.1} parent=47 // pred_check_branch
          %601 = sbr.rel (%p599) target = $region52
        $region51: #{tpu_custom_call.1} parent=47 // pred_region
          %s602 = sand.u32 %s154, 1
          %s603 = scalar_lea.sflag [#allocation3], %s602
          %s604 = sand.u32 %s154, 1
          %s605 = smul.addr %s604, 8
          %s606 = scalar_lea.vmem [#allocation2], %s605
          %607 = dma.done %s603, 128
        $region52: #{tpu_custom_call.1} parent=47 // pred_fallthru
          _
      $region48: #{tpu_custom_call.1} parent=5 // pred_fallthru
        _
    $region6: #{tpu_custom_call.1} parent=1 // loop_footer
      %s18 = sadd.s32 1, %s14
    $region7: #{tpu_custom_call.1} parent=1 // loop_footer_branch
      %13 = sbr.rel target = $region3
    $region8: #{tpu_custom_call.1} parent=1 // loop_exit
      _
    %608 = vsyncpa [#allocation3], 1
    %s609 = scalar_lea.sflag [#allocation3], 1
    %610 = vsyncpa %s609, 1

</llo_original>
